<compile_context>
chip_gen: v5e
topology: v5e:2x2
jax: 0.10.0
libtpu: 0.0.40
codegen_flags: <defaults>
</compile_context>

<pallas_src>
import jax
import jax.numpy as jnp
from jax import lax
from jax.experimental import pallas as pl
from jax.experimental.pallas import tpu as pltpu


# Contract dim 1 of x with dim 1 of W (W kept in (out_features, in_features)
# layout => x @ W.T without any host-side transpose).
_NT_DIMS = (((1,), (1,)), ((), ()))


# ----------------------------- kernels --------------------------------------

def _exact_sigmoid(z):
    # Exact division; exp(-z) -> inf for very negative z gives exactly 0.
    return 1.0 / (1.0 + jnp.exp(-z))


def _linear_sigmoid_kernel(x_ref, w_ref, o_ref):
    """One (TM, TN) output tile of sigmoid(x @ W.T); grid = (i, j, k).

    o_ref is f32 and resident across the k (reduction) axis, so it doubles as
    the accumulator -- no VMEM scratch needed.
    """
    @pl.when(pl.program_id(2) == 0)
    def _init():
        o_ref[...] = jnp.zeros_like(o_ref)

    # In-kernel bf16 cast of the f32 tiles (free VPU work under the MXU).
    o_ref[...] += lax.dot_general(
        x_ref[...].astype(jnp.bfloat16),
        w_ref[...].astype(jnp.bfloat16),
        dimension_numbers=_NT_DIMS,
        preferred_element_type=jnp.float32)

    @pl.when(pl.program_id(2) == pl.num_programs(2) - 1)
    def _finalize():
        o_ref[...] = _exact_sigmoid(o_ref[...])


def _linear_sigmoid_mse_kernel(x_ref, w_ref, y_ref, part_ref, acc_ref):
    """Fused matmul + sigmoid + per-tile partial sum of squared error.

    Each (i, j) tile writes its scalar partial sum broadcast into its own
    (8, 128) lane-dense output block (disjoint per tile, so the i/j grid axes
    stay safely 'parallel'); the wrapper finishes the tiny global reduction.
    """
    @pl.when(pl.program_id(2) == 0)
    def _init():
        acc_ref[...] = jnp.zeros_like(acc_ref)

    acc_ref[...] += lax.dot_general(
        x_ref[...].astype(jnp.bfloat16),
        w_ref[...].astype(jnp.bfloat16),
        dimension_numbers=_NT_DIMS,
        preferred_element_type=jnp.float32)

    @pl.when(pl.program_id(2) == pl.num_programs(2) - 1)
    def _finalize():
        p = _exact_sigmoid(acc_ref[...])
        d = p - y_ref[...]
        s = jnp.sum(d * d)                       # once per (i, j) tile
        part_ref[...] = jnp.full(part_ref.shape, s, dtype=jnp.float32)


# ----------------------------- sizing ----------------------------------------

def _chip_caps():
    """(vmem_limit_bytes, tile_cap) per TPU generation."""
    kind = ""
    try:
        kind = jax.devices()[0].device_kind.lower()
    except Exception:
        pass
    if "v7" in kind:                         # 64 MiB physical VMEM per TC
        return 40 * 1024 * 1024, 1024
    if "v5e" in kind or "v5 lite" in kind or "v5lite" in kind:
        return 96 * 1024 * 1024, 512         # 512-tiles already ~compute-bound
    if "v6" in kind:
        return 96 * 1024 * 1024, 1024        # worst compute/BW ratio -> big tiles
    # Unknown / older generation: conservative budget that fits everywhere.
    return 32 * 1024 * 1024, 512


def _largest_divisor_tile(dim, cap, align):
    """Largest t <= cap with dim % t == 0 and t % align == 0 (or t == dim)."""
    if dim <= cap:
        return dim
    t = (cap // align) * align
    while t >= align:
        if dim % t == 0:
            return t
        t -= align
    # TODO(synk): general shapes need pl.cdiv grids with masked edge tiles;
    # fall back to the full dim (exact but possibly VMEM-heavy).
    return dim


def _pick_tiles(B, H, tile_cap):
    # Small batch: tm = B so gm == 1 and W is streamed from HBM exactly once.
    tm = B if B <= 1024 else _largest_divisor_tile(B, tile_cap, 8)
    tn = _largest_divisor_tile(H, tile_cap, 128)
    tk = _largest_divisor_tile(H, 512, 128)
    # v7x megacore: keep the j axis at >= 2 blocks when gm == 1 and H allows
    # (harmless for bandwidth since W blocks are still fetched exactly once).
    if B // tm == 1 and H // tn == 1 and H % 256 == 0:
        tn = H // 2
    return tm, tn, tk


# ----------------------------- wrapper ---------------------------------------

def torchmodel_forward(x, w, y=None):
    """Equivalent of torchmodel.forward.

    x: (B, H) float32
    w: (H, H) float32 in PyTorch Linear layout (out_features, in_features)
    y: optional (B, H) float32 target; if given returns scalar MSE loss,
       otherwise returns sigmoid(x @ w.T) with shape (B, H).
    """
    B, H = x.shape
    assert w.shape == (H, H)
    vmem_limit, tile_cap = _chip_caps()
    tm, tn, tk = _pick_tiles(B, H, tile_cap)
    if (B % tm) or (H % tn) or (H % tk):
        raise ValueError(f"B={B}, H={H} not divisible by tiles ({tm},{tn},{tk})")
    gm, gn, gk = B // tm, H // tn, H // tk

    # Deep reduction -> triple-buffer the streamed inputs (VMEM has headroom).
    if gk >= 4:
        x_spec = pl.BlockSpec((tm, tk), lambda i, j, k: (i, k),
                              pipeline_mode=pl.Buffered(3))
        w_spec = pl.BlockSpec((tn, tk), lambda i, j, k: (j, k),
                              pipeline_mode=pl.Buffered(3))
    else:
        x_spec = pl.BlockSpec((tm, tk), lambda i, j, k: (i, k))
        w_spec = pl.BlockSpec((tn, tk), lambda i, j, k: (j, k))  # W stays (out, in)

    compiler_params = pltpu.CompilerParams(
        dimension_semantics=("parallel", "parallel", "arbitrary"),
        vmem_limit_bytes=vmem_limit)

    x_f32 = x.astype(jnp.float32)
    w_f32 = w.astype(jnp.float32)

    if y is None:
        cost = pl.CostEstimate(
            flops=2 * B * H * H,
            transcendentals=B * H,
            bytes_accessed=4 * B * H + 4 * H * H + 4 * B * H)
        # Output stays f32 (accumulator-in-place + closest parity with the
        # PyTorch f32 reference). Cast to bf16 here if consumers tolerate it.
        return pl.pallas_call(
            _linear_sigmoid_kernel,
            out_shape=jax.ShapeDtypeStruct((B, H), jnp.float32),
            grid_spec=pltpu.PrefetchScalarGridSpec(
                num_scalar_prefetch=0,
                grid=(gm, gn, gk),
                in_specs=[x_spec, w_spec],
                out_specs=pl.BlockSpec((tm, tn), lambda i, j, k: (i, j))),
            compiler_params=compiler_params,
            cost_estimate=cost,
        )(x_f32, w_f32)

    # Loss path: fused matmul + sigmoid + per-tile partial SSE.
    y_spec = pl.BlockSpec((tm, tn), lambda i, j, k: (i, j))
    cost = pl.CostEstimate(
        flops=2 * B * H * H + 3 * B * H,
        transcendentals=B * H,
        bytes_accessed=4 * B * H + 4 * H * H + 4 * B * H + gm * gn * 8 * 128 * 4)
    partials = pl.pallas_call(
        _linear_sigmoid_mse_kernel,
        out_shape=jax.ShapeDtypeStruct((gm * 8, gn * 128), jnp.float32),
        grid_spec=pltpu.PrefetchScalarGridSpec(
            num_scalar_prefetch=0,
            grid=(gm, gn, gk),
            in_specs=[x_spec, w_spec, y_spec],
            out_specs=pl.BlockSpec((8, 128), lambda i, j, k: (i, j)),
            scratch_shapes=[pltpu.VMEM((tm, tn), jnp.float32)]),
        compiler_params=compiler_params,
        cost_estimate=cost,
    )(x_f32, w_f32, y.astype(jnp.float32))

    # Each per-tile scalar is replicated 1024x in its (8,128) block: dense sum
    # (layout-friendly, no strided slice) with the matching global normalizer.
    return jnp.sum(partials) / (B * H * 8 * 128)


# ----------------------------- main -------------------------------------------

if __name__ == "__main__":
    # Small shapes consistent with Linear(hidden, hidden); 16 x 128 keeps the
    # (8, 128) native tile alignment while staying tiny.
    batch, hidden = 16, 128

    key = jax.random.PRNGKey(0)
    kx, ky, kw = jax.random.split(key, 3)

    x = jax.random.normal(kx, (batch, hidden), dtype=jnp.float32)
    y = jax.random.uniform(ky, (batch, hidden), dtype=jnp.float32)

    # Weight init mimicking nn.Linear default: U(-1/sqrt(in), 1/sqrt(in)), (out, in).
    bound = 1.0 / jnp.sqrt(jnp.float32(hidden))
    w = jax.random.uniform(kw, (hidden, hidden), dtype=jnp.float32,
                           minval=-bound, maxval=bound)

    # Path 1: no target -> activations.
    y_pre = jax.block_until_ready(torchmodel_forward(x, w))

    # Path 2: target given -> scalar MSE loss.
    loss = jax.block_until_ready(torchmodel_forward(x, w, y))

    # Sanity check against the plain-JAX f32 reference. Tolerances cover the
    # bf16 MXU operands (sigmoid itself is exact).
    ref_pre = jax.nn.sigmoid(x @ w.T)
    ref_loss = jnp.mean((ref_pre - y) ** 2)
    assert y_pre.shape == (batch, hidden)
    assert jnp.allclose(y_pre, ref_pre, atol=2e-2, rtol=2e-2)
    assert jnp.allclose(loss, ref_loss, atol=5e-3, rtol=5e-2)

    print("KERNEL_OK")
</pallas_src>

<mosaic_0001>
module attributes {stable_mosaic.version = 11 : i64} {
  func.func @_linear_sigmoid_kernel(%arg0: i32, %arg1: i32, %arg2: i32, %arg3: memref<16x128xf32, #tpu.memory_space<vmem>>, %arg4: memref<128x128xf32, #tpu.memory_space<vmem>>, %arg5: memref<16x128xf32, #tpu.memory_space<vmem>>) attributes {dimension_semantics = [#tpu.dimension_semantics<parallel>, #tpu.dimension_semantics<parallel>, #tpu.dimension_semantics<arbitrary>], iteration_bounds = array<i64: 1, 1, 1>, scalar_prefetch = 0 : i64, scratch_operands = 0 : i64, tpu.core_type = #tpu.core_type<tc>, window_params = [{transform_indices = @transform_0, window_bounds = array<i64: 16, 128>}, {transform_indices = @transform_1, window_bounds = array<i64: 128, 128>}, {transform_indices = @transform_2, window_bounds = array<i64: 16, 128>}]} {
    %c0_i32 = arith.constant 0 : i32
    %0 = arith.cmpi eq, %arg2, %c0_i32 : i32
    %1 = arith.extui %0 : i1 to i32
    %c0_i32_0 = arith.constant 0 : i32
    %2 = arith.cmpi ne, %1, %c0_i32_0 : i32
    scf.if %2 {
      %cst_10 = arith.constant 0.000000e+00 : f32
      %14 = vector.broadcast %cst_10 : f32 to vector<16x128xf32>
      %c0_11 = arith.constant 0 : index
      %c0_12 = arith.constant 0 : index
      %15 = vector.load %arg5[%c0_11, %c0_12] : memref<16x128xf32, #tpu.memory_space<vmem>>, vector<16x128xf32>
      tpu.vector_store %arg5[%c0_11, %c0_12], %14 {strides = array<i32>} : memref<16x128xf32, #tpu.memory_space<vmem>>, vector<16x128xf32>,
    } else {
    }
    %c0 = arith.constant 0 : index
    %c0_1 = arith.constant 0 : index
    %3 = vector.load %arg5[%c0, %c0_1] : memref<16x128xf32, #tpu.memory_space<vmem>>, vector<16x128xf32>
    %c0_2 = arith.constant 0 : index
    %c0_3 = arith.constant 0 : index
    %4 = vector.load %arg3[%c0_2, %c0_3] : memref<16x128xf32, #tpu.memory_space<vmem>>, vector<16x128xf32>
    %5 = arith.truncf %4 : vector<16x128xf32> to vector<16x128xbf16>
    %c0_4 = arith.constant 0 : index
    %c0_5 = arith.constant 0 : index
    %6 = vector.load %arg4[%c0_4, %c0_5] : memref<128x128xf32, #tpu.memory_space<vmem>>, vector<128x128xf32>
    %7 = arith.truncf %6 : vector<128x128xf32> to vector<128x128xbf16>
    %cst = arith.constant dense<0.000000e+00> : vector<16x128xf32>
    %8 = tpu.matmul %5, %7, %cst {dimension_numbers = #tpu.dot_dimension_numbers<[1], [1], [0], [0], [0, 0, 1, 0], [], []>} : vector<16x128xbf16>, vector<128x128xbf16>, vector<16x128xf32> -> vector<16x128xf32>
    %9 = arith.addf %3, %8 : vector<16x128xf32>
    %c0_6 = arith.constant 0 : index
    %c0_7 = arith.constant 0 : index
    %10 = vector.load %arg5[%c0_6, %c0_7] : memref<16x128xf32, #tpu.memory_space<vmem>>, vector<16x128xf32>
    tpu.vector_store %arg5[%c0_6, %c0_7], %9 {strides = array<i32>} : memref<16x128xf32, #tpu.memory_space<vmem>>, vector<16x128xf32>,
    %c0_i32_8 = arith.constant 0 : i32
    %11 = arith.cmpi eq, %arg2, %c0_i32_8 : i32
    %12 = arith.extui %11 : i1 to i32
    %c0_i32_9 = arith.constant 0 : i32
    %13 = arith.cmpi ne, %12, %c0_i32_9 : i32
    scf.if %13 {
      %c0_10 = arith.constant 0 : index
      %c0_11 = arith.constant 0 : index
      %14 = vector.load %arg5[%c0_10, %c0_11] : memref<16x128xf32, #tpu.memory_space<vmem>>, vector<16x128xf32>
      %cst_12 = arith.constant 0.000000e+00 : f32
      %15 = vector.broadcast %cst_12 : f32 to vector<16x128xf32>
      %16 = arith.subf %15, %14 : vector<16x128xf32>
      %17 = math.exp %16 : vector<16x128xf32>
      %cst_13 = arith.constant 1.000000e+00 : f32
      %18 = vector.broadcast %cst_13 : f32 to vector<16x128xf32>
      %19 = arith.addf %18, %17 : vector<16x128xf32>
      %cst_14 = arith.constant 1.000000e+00 : f32
      %20 = vector.broadcast %cst_14 : f32 to vector<16x128xf32>
      %21 = arith.divf %20, %19 : vector<16x128xf32>
      %c0_15 = arith.constant 0 : index
      %c0_16 = arith.constant 0 : index
      %22 = vector.load %arg5[%c0_15, %c0_16] : memref<16x128xf32, #tpu.memory_space<vmem>>, vector<16x128xf32>
      tpu.vector_store %arg5[%c0_15, %c0_16], %21 {strides = array<i32>} : memref<16x128xf32, #tpu.memory_space<vmem>>, vector<16x128xf32>,
    } else {
    }
    return
  }
  func.func @transform_0(%arg0: i32, %arg1: i32, %arg2: i32) -> (i32, i32) {
    %c0_i32 = arith.constant 0 : i32
    return %arg0, %arg2 : i32, i32
  }
  func.func @transform_1(%arg0: i32, %arg1: i32, %arg2: i32) -> (i32, i32) {
    %c0_i32 = arith.constant 0 : i32
    return %arg1, %arg2 : i32, i32
  }
  func.func @transform_2(%arg0: i32, %arg1: i32, %arg2: i32) -> (i32, i32) {
    %c0_i32 = arith.constant 0 : i32
    return %arg0, %arg1 : i32, i32
  }
}

</mosaic_0001>

<llo_original>
// kernel: tpu_custom_call.1
$region0: #{tpu_custom_call.1}
  #allocation0 [shape = 'u32[]', space=smem, size = 0x4, offset = 0x4, fixed_abs, tag = 'smem constant byte address 0x4 - core index']
  #allocation1 [shape = 'u32[72,128]{1,0:T(1,128)}', space=vmem, size = 0x9000, scoped, tag = 'internal scratch']
  %s0 = inlined_call_operand.hbm [shape: f32[16,128], index: 0, kind: input, shape index: {}]
  %s1 = inlined_call_operand.hbm [shape: f32[128,128], index: 1, kind: input, shape index: {}]
  %s2 = inlined_call_operand.hbm [shape: f32[16,128], index: 2, kind: output, shape index: {}]
  %s3 = sld [smem:[#allocation0]]
  $region34: #{tpu_custom_call.1} parent=0
    _
  %s5 = ssub.s32 1, %s3
  %s6 = scalar_select 0, %s5, %s3
  $region1: #{tpu_custom_call.1} parent=0
    #allocation2 [shape = 'u8[8192]{0}', space=vmem, size = 0x2000, scoped, tag = 'input window, operand 0, single buffered']
    #allocation3 [shape = 's32[1]{0}', space=sflag, size = 0x4, scoped, tag = 'scoped memory for tpu_custom_call.1']
    #allocation4 [shape = 's32[1]{0}', space=sflag, size = 0x4, scoped, tag = 'scoped memory for tpu_custom_call.1']
    #allocation5 [shape = 'u8[65536]{0}', space=vmem, size = 0x10000, scoped, tag = 'input window, operand 1, single buffered']
    #allocation6 [shape = 's32[1]{0}', space=sflag, size = 0x4, scoped, tag = 'scoped memory for tpu_custom_call.1']
    #allocation7 [shape = 'u8[8192]{0}', space=vmem, size = 0x2000, scoped, tag = 'output window, operand 0, single buffered']
    %7 = vsyncpa [#allocation3], 0
    %8 = vsyncpa [#allocation6], 0
    %9 = vsyncpa [#allocation4], 0
    // Predicated region
    $region2: #{tpu_custom_call.1} parent=1 // pred_check
      _
    $region3: #{tpu_custom_call.1} parent=1 // pred_check_branch
      %11 = sbr.rel (0) target = $region5
    $region4: #{tpu_custom_call.1} parent=1 // pred_region
      %13 = vsyncadd [#allocation3], 0
      %s14 = sshll.u32 %s0, 4
      %s15 = int_to_ptr.hbm [resolvable:$true] %s14
      %s16 = sshll.u32 [#allocation2], 4
      %s17 = int_to_ptr.vmem [resolvable:$true] %s16
      %22 = dma.hbm_to_vmem [thread:$0]  %s15, 256, %s17, [#allocation3], 128, 128, 8
    $region5: #{tpu_custom_call.1} parent=1 // pred_fallthru
      _
    // Predicated region
    $region6: #{tpu_custom_call.1} parent=1 // pred_check
      _
    $region7: #{tpu_custom_call.1} parent=1 // pred_check_branch
      %24 = sbr.rel (0) target = $region9
    $region8: #{tpu_custom_call.1} parent=1 // pred_region
      %26 = vsyncadd [#allocation6], 0
      %s27 = sshll.u32 %s1, 4
      %s28 = int_to_ptr.hbm [resolvable:$true] %s27
      %s29 = sshll.u32 [#allocation5], 4
      %s30 = int_to_ptr.vmem [resolvable:$true] %s29
      %35 = dma.hbm_to_vmem [thread:$0]  %s28, 2048, %s30, [#allocation6], 128, 128, 8
    $region9: #{tpu_custom_call.1} parent=1 // pred_fallthru
      _
    // Predicated region
    $region10: #{tpu_custom_call.1} parent=1 // pred_check
      _
    $region11: #{tpu_custom_call.1} parent=1 // pred_check_branch
      %37 = sbr.rel (0) target = $region13
    $region12: #{tpu_custom_call.1} parent=1 // pred_region
      %39 = dma.done [#allocation3], 256
    $region13: #{tpu_custom_call.1} parent=1 // pred_fallthru
      _
    // Predicated region
    $region14: #{tpu_custom_call.1} parent=1 // pred_check
      _
    $region15: #{tpu_custom_call.1} parent=1 // pred_check_branch
      %41 = sbr.rel (0) target = $region17
    $region16: #{tpu_custom_call.1} parent=1 // pred_region
      %43 = dma.done [#allocation6], 2048
    $region17: #{tpu_custom_call.1} parent=1 // pred_fallthru
      _
    %p44 = scmp.eq.s32.totalorder 0, 0
    // Predicated region
    $region18: #{tpu_custom_call.1} parent=1 // pred_check
      %p45 = pneg %p44
    $region19: #{tpu_custom_call.1} parent=1 // pred_check_branch
      %47 = sbr.rel (%p45) target = $region21
    $region20: #{tpu_custom_call.1} parent=1 // pred_region
      %48 = vst [vmem:[#allocation7] sm:$0xff] 0.0
      %49 = vst [vmem:[#allocation7 + $0x8] sm:$0xff] 0.0
    $region21: #{tpu_custom_call.1} parent=1 // pred_fallthru
      _
    %v50 = vld [vmem:[#allocation7] sm:$0xff]
    %v51 = vld [vmem:[#allocation7 + $0x8] sm:$0xff]
    %v52 = vld [vmem:[#allocation2] sm:$0xff]
    %v53 = vld [vmem:[#allocation2 + $0x8] sm:$0xff]
    %v54 = vpack.c.bf16 %v53, %v52
    %v55 = vld [vmem:[#allocation5] sm:$0xff]
    %v56 = vld [vmem:[#allocation5 + $0x8] sm:$0xff]
    %v57 = vld [vmem:[#allocation5 + $0x10] sm:$0xff]
    %v58 = vld [vmem:[#allocation5 + $0x18] sm:$0xff]
    %v59 = vld [vmem:[#allocation5 + $0x20] sm:$0xff]
    %v60 = vld [vmem:[#allocation5 + $0x28] sm:$0xff]
    %v61 = vld [vmem:[#allocation5 + $0x30] sm:$0xff]
    %v62 = vld [vmem:[#allocation5 + $0x38] sm:$0xff]
    %v63 = vld [vmem:[#allocation5 + $0x40] sm:$0xff]
    %v64 = vld [vmem:[#allocation5 + $0x48] sm:$0xff]
    %v65 = vld [vmem:[#allocation5 + $0x50] sm:$0xff]
    %v66 = vld [vmem:[#allocation5 + $0x58] sm:$0xff]
    %v67 = vld [vmem:[#allocation5 + $0x60] sm:$0xff]
    %v68 = vld [vmem:[#allocation5 + $0x68] sm:$0xff]
    %v69 = vld [vmem:[#allocation5 + $0x70] sm:$0xff]
    %v70 = vld [vmem:[#allocation5 + $0x78] sm:$0xff]
    %v71 = vpack.c.bf16 %v56, %v55
    %v72 = vpack.c.bf16 %v58, %v57
    %v73 = vpack.c.bf16 %v60, %v59
    %v74 = vpack.c.bf16 %v62, %v61
    %v75 = vpack.c.bf16 %v64, %v63
    %v76 = vpack.c.bf16 %v66, %v65
    %v77 = vpack.c.bf16 %v68, %v67
    %v78 = vpack.c.bf16 %v70, %v69
    %79 = vmatpush.bf16.xpose.msra.mxu0 %v78
    %80 = vmatpush.bf16.xpose.msra.mxu0 %v77
    %81 = vmatpush.bf16.xpose.msra.mxu0 %v76
    %82 = vmatpush.bf16.xpose.msra.mxu0 %v75
    %83 = vmatpush.bf16.xpose.msra.mxu0 %v74
    %84 = vmatpush.bf16.xpose.msra.mxu0 %v73
    %85 = vmatpush.bf16.xpose.msra.mxu0 %v72
    %86 = vmatpush.bf16.xpose.msra.mxu0 %v71
    %87 = vmatmul.bf16.gmra.mxu0 %v54
    %v88 = vpop.f32.mrf.mxu0
    %v89 = vadd.f32 0.0, %v88
    %v90 = vpop.f32.mrf.mxu0
    %v91 = vadd.f32 0.0, %v90
    %92 = vdwg.mxu0
    %v93 = vadd.f32 %v50, %v89
    %v94 = vadd.f32 %v51, %v91
    %95 = vst [vmem:[#allocation7] sm:$0xff] %v93
    %96 = vst [vmem:[#allocation7 + $0x8] sm:$0xff] %v94
    // Predicated region
    $region22: #{tpu_custom_call.1} parent=1 // pred_check
      %p97 = pneg %p44
    $region23: #{tpu_custom_call.1} parent=1 // pred_check_branch
      %99 = sbr.rel (%p97) target = $region25
    $region24: #{tpu_custom_call.1} parent=1 // pred_region
      %v100 = vld [vmem:[#allocation7] sm:$0xff]
      %v101 = vld [vmem:[#allocation7 + $0x8] sm:$0xff]
      %v102 = vsub.f32 0.0, %v100
      %v103 = vsub.f32 0.0, %v101
      %v104 = vmul.f32 %v102, 1.442695
      %v105 = vpow.pop %v104
      %v106 = vmul.f32 %v103, 1.442695
      %v107 = vpow.pop %v106
      %v108 = vadd.f32 %v105, 1.0
      %v109 = vadd.f32 %v107, 1.0
      %v110 = vrcp.pop %v108
      %v111 = vmul.f32 %v108, %v110
      %v112 = vsub.f32 1.0, %v111
      %v113 = vmul.f32 %v110, %v112
      %v114 = vadd.f32 %v110, %v113
      %vm115 = vweird.f32 %v108
      %vm116 = vweird.f32 %v110
      %vm117 = vmor %vm115, %vm116
      %v118 = vsel %vm117, %v110, %v114
      %v119 = vand.u32 2147483647, %v108
      %vm120 = vcmp.eq.f32.partialorder %v119, 8.507059e+37
      %v121 = vand.u32 %v108, 2147483648
      %v122 = vor.u32 1.1754944e-38, %v121
      %v123 = vsel %vm120, %v122, %v118
      %v124 = vmul.f32 1.0, %v123
      %v125 = vrcp.pop %v109
      %v126 = vmul.f32 %v109, %v125
      %v127 = vsub.f32 1.0, %v126
      %v128 = vmul.f32 %v125, %v127
      %v129 = vadd.f32 %v125, %v128
      %vm130 = vweird.f32 %v109
      %vm131 = vweird.f32 %v125
      %vm132 = vmor %vm130, %vm131
      %v133 = vsel %vm132, %v125, %v129
      %v134 = vand.u32 2147483647, %v109
      %vm135 = vcmp.eq.f32.partialorder %v134, 8.507059e+37
      %v136 = vand.u32 %v109, 2147483648
      %v137 = vor.u32 1.1754944e-38, %v136
      %v138 = vsel %vm135, %v137, %v133
      %v139 = vmul.f32 1.0, %v138
      %140 = vst [vmem:[#allocation7] sm:$0xff] %v124
      %141 = vst [vmem:[#allocation7 + $0x8] sm:$0xff] %v139
    $region25: #{tpu_custom_call.1} parent=1 // pred_fallthru
      _
    // Predicated region
    $region26: #{tpu_custom_call.1} parent=1 // pred_check
      _
    $region27: #{tpu_custom_call.1} parent=1 // pred_check_branch
      %143 = sbr.rel (0) target = $region29
    $region28: #{tpu_custom_call.1} parent=1 // pred_region
      %145 = vsyncadd [#allocation4], 0
      %s146 = sshll.u32 [#allocation7], 4
      %s147 = int_to_ptr.vmem [resolvable:$true] %s146
      %s148 = sshll.u32 %s2, 4
      %s149 = int_to_ptr.hbm [resolvable:$true] %s148
      %154 = dma.vmem_to_hbm [thread:$0]  %s147, 256, %s149, [#allocation4], 128, 128, 8
    $region29: #{tpu_custom_call.1} parent=1 // pred_fallthru
      _
    // Predicated region
    $region30: #{tpu_custom_call.1} parent=1 // pred_check
      _
    $region31: #{tpu_custom_call.1} parent=1 // pred_check_branch
      %156 = sbr.rel (0) target = $region33
    $region32: #{tpu_custom_call.1} parent=1 // pred_region
      %158 = dma.done [#allocation4], 256
    $region33: #{tpu_custom_call.1} parent=1 // pred_fallthru
      _
    %159 = vsyncpa [#allocation3], 1
    %160 = vsyncpa [#allocation6], 1
    %161 = vsyncpa [#allocation4], 1

</llo_original>
